<compile_context>
chip_gen: v5e
topology: v5e:2x2
jax: 0.10.0
libtpu: 0.0.40
codegen_flags: <defaults>
</compile_context>

<pallas_src>
import functools
import math

import jax
import jax.numpy as jnp
from jax.experimental import pallas as pl
from jax.experimental.pallas import tpu as pltpu

# ----------------------------- configuration -------------------------------
B = 8             # batch
D = 16            # data dimensionality (must be even)
M = 32            # hidden width of the s/t MLPs
NUM_FLOWS = 4
NEG_SLOPE = 0.01  # PyTorch LeakyReLU default

DH = D // 2
H2 = 2 * M        # fused (s|t) hidden width


def _round_up(n, m):
    return ((n + m - 1) // m) * m


# Row layout of the packed parameter buffer (per flow).  Weight-matrix
# sections start at multiples of 16 rows so bf16 sublane-packed slices stay
# tile-aligned; bias sections hold one meaningful row (rest zero padding).
R_W1 = 0                                # (DH, H2)
R_B1 = R_W1 + DH                        # (1,  H2)
R_W2 = _round_up(R_B1 + 1, 16)          # (H2, H2)
R_B2 = R_W2 + H2                        # (1,  H2)
R_W3 = _round_up(R_B2 + 1, 16)          # (H2, H2)  cols [0:D] used, rest zero
R_B3 = R_W3 + H2                        # (1,  H2)  cols [0:D] used, rest zero
R_TOT = _round_up(R_B3 + 1, 16)         # 176 rows total per flow


# ------------------------------- kernel ------------------------------------
def _realnvp_kernel(num_flows, x_ref, w_ref, out_ref):
    x = x_ref[...].astype(jnp.float32)
    bsz, d = x.shape
    dh = d // 2

    def leaky(h):
        # LeakyReLU with 0 < slope < 1:  max(h, slope*h) == where(h>0, h, slope*h)
        return jnp.maximum(h, NEG_SLOPE * h)

    def dot_bf16(act_f32, w_bf16):
        # bf16 MXU feeds, f32 accumulation.
        return jnp.dot(act_f32.astype(jnp.bfloat16), w_bf16,
                       preferred_element_type=jnp.float32)

    # Two halves kept separate for the whole flow; the channel flip is folded
    # into the (host-prepared) weights of odd flows, so no permutation here.
    a = x[:, :dh]
    b = x[:, dh:]
    s_acc = jnp.zeros((bsz, dh), jnp.float32)

    # num_flows is small & static -> fully unrolled (flows are sequentially
    # dependent; keep them out of the grid / fori_loop).
    for i in range(num_flows):
        w1 = w_ref[i, R_W1:R_W1 + dh, :]                       # (dh, 2M) bf16
        b1 = w_ref[i, R_B1:R_B1 + 1, :].astype(jnp.float32)    # (1, 2M)
        w2 = w_ref[i, R_W2:R_W2 + H2, :]                       # (2M, 2M) bf16
        b2 = w_ref[i, R_B2:R_B2 + 1, :].astype(jnp.float32)    # (1, 2M)
        w3 = w_ref[i, R_W3:R_W3 + H2, :]                       # (2M, 2M) bf16
        b3 = w_ref[i, R_B3:R_B3 + 1, :].astype(jnp.float32)    # (1, 2M)

        # Fused s/t MLP: 3 matmuls per flow.
        h = leaky(dot_bf16(a, w1) + b1)
        h = leaky(dot_bf16(h, w2) + b2)
        o = dot_bf16(h, w3) + b3            # cols [0:dh]=s-logits, [dh:d]=t
        s = jnp.tanh(o[:, :dh])             # s-net output (tanh), f32
        t = o[:, dh:d]                      # t-net output (linear), f32
        yb = (b - t) * jnp.exp(-s)          # forward coupling, f32
        s_acc = s_acc + s                   # elementwise; reduce once at end
        a, b = yb, a                        # role swap == flip (rev. in weights)

    # Single cross-lane reduction for the whole epilogue:
    #   log_prior + log_det = sum(-0.5*z^2) - 0.5*D*log(2*pi) - sum(s_acc)
    u = -0.5 * (a * a + b * b) - s_acc
    out_ref[...] = (jnp.sum(u, axis=1, keepdims=True)
                    - 0.5 * d * math.log(2.0 * math.pi))


# ------------------------------- wrapper ------------------------------------
@jax.jit
def realnvp_forward(x, packed_params):
    bsz = x.shape[0]
    out = pl.pallas_call(
        functools.partial(_realnvp_kernel, NUM_FLOWS),
        out_shape=jax.ShapeDtypeStruct((bsz, 1), jnp.float32),
        in_specs=[pl.BlockSpec(memory_space=pltpu.MemorySpace.VMEM),
                  pl.BlockSpec(memory_space=pltpu.MemorySpace.VMEM)],
        out_specs=pl.BlockSpec(memory_space=pltpu.MemorySpace.VMEM),
    )(x.astype(jnp.float32), packed_params)
    return out.reshape(bsz)


# --------------------------- parameter creation ------------------------------
def _linear_init(key, fan_in, fan_out, num_flows):
    # PyTorch nn.Linear default: U(-1/sqrt(fan_in), 1/sqrt(fan_in)) for W and b.
    kw, kb = jax.random.split(key)
    bound = 1.0 / math.sqrt(fan_in)
    w = jax.random.uniform(kw, (num_flows, fan_in, fan_out), jnp.float32,
                           minval=-bound, maxval=bound)
    b = jax.random.uniform(kb, (num_flows, 1, fan_out), jnp.float32,
                           minval=-bound, maxval=bound)
    return w, b


def make_params(key):
    dh = D // 2
    keys = jax.random.split(key, 6)
    ws1, bs1 = _linear_init(keys[0], dh, M, NUM_FLOWS)
    ws2, bs2 = _linear_init(keys[1], M, M, NUM_FLOWS)
    ws3, bs3 = _linear_init(keys[2], M, dh, NUM_FLOWS)
    wt1, bt1 = _linear_init(keys[3], dh, M, NUM_FLOWS)
    wt2, bt2 = _linear_init(keys[4], M, M, NUM_FLOWS)
    wt3, bt3 = _linear_init(keys[5], M, dh, NUM_FLOWS)
    return [ws1, bs1, ws2, bs2, ws3, bs3, wt1, bt1, wt2, bt2, wt3, bt3]


def _block_diag(a_mat, b_mat):
    ra, ca = a_mat.shape
    rb, cb = b_mat.shape
    top = jnp.concatenate([a_mat, jnp.zeros((ra, cb), a_mat.dtype)], axis=1)
    bot = jnp.concatenate([jnp.zeros((rb, ca), b_mat.dtype), b_mat], axis=1)
    return jnp.concatenate([top, bot], axis=0)


def prepare_packed_params(params):
    """Host-side (done once):
      * fold the channel flip into odd-flow weights,
      * fuse the s-net and t-net into a single MLP per flow,
      * pack every flow's (W1,b1,W2,b2,W3,b3) into ONE bf16 buffer
        (NUM_FLOWS, R_TOT, 2M) with tile-aligned static row offsets,
    so the kernel needs a single parameter DMA."""
    ws1, bs1, ws2, bs2, ws3, bs3, wt1, bt1, wt2, bt2, wt3, bt3 = params
    nf = ws1.shape[0]
    dh = ws1.shape[1]
    flows = []
    for i in range(nf):
        s1, t1 = ws1[i], wt1[i]
        s3, t3 = ws3[i], wt3[i]
        sb3, tb3 = bs3[i], bt3[i]
        if i % 2 == 1:
            # Both halves arrive in reversed element order at odd flows:
            #  - reverse W1 rows (input side, both nets)
            #  - reverse W3/b3 output columns so s/t match the reversed "b" half
            s1, t1 = s1[::-1, :], t1[::-1, :]
            s3, t3 = s3[:, ::-1], t3[:, ::-1]
            sb3, tb3 = sb3[:, ::-1], tb3[:, ::-1]
        w1 = jnp.concatenate([s1, t1], axis=1)                 # (dh, 2M)
        b1 = jnp.concatenate([bs1[i], bt1[i]], axis=1)         # (1, 2M)
        w2 = _block_diag(ws2[i], wt2[i])                       # (2M, 2M)
        b2 = jnp.concatenate([bs2[i], bt2[i]], axis=1)         # (1, 2M)
        w3 = _block_diag(s3, t3)                               # (2M, D)
        b3 = jnp.concatenate([sb3, tb3], axis=1)               # (1, D)

        blk = jnp.zeros((R_TOT, H2), jnp.float32)
        blk = blk.at[R_W1:R_W1 + dh, :].set(w1)
        blk = blk.at[R_B1:R_B1 + 1, :].set(b1)
        blk = blk.at[R_W2:R_W2 + H2, :].set(w2)
        blk = blk.at[R_B2:R_B2 + 1, :].set(b2)
        blk = blk.at[R_W3:R_W3 + H2, :D].set(w3)               # zero-padded cols
        blk = blk.at[R_B3:R_B3 + 1, :D].set(b3)
        flows.append(blk)
    return jnp.stack(flows).astype(jnp.bfloat16)               # (nf, R_TOT, 2M)


# ---------------------------- pure-JAX reference -----------------------------
def realnvp_reference(x, params, matmul_dtype=jnp.float32):
    """Literal translation of the PyTorch module (unfused, with real flips).
    With matmul_dtype=bfloat16 it mirrors the kernel's arithmetic exactly
    (bf16 MXU feeds + bf16-stored biases, f32 accumulation/elementwise)."""
    ws1, bs1, ws2, bs2, ws3, bs3, wt1, bt1, wt2, bt2, wt3, bt3 = params
    dh = D // 2

    def leaky(h):
        return jnp.maximum(h, NEG_SLOPE * h)

    def lin(h, w, b):
        y = jnp.dot(h.astype(matmul_dtype), w.astype(matmul_dtype),
                    preferred_element_type=jnp.float32)
        return y + b.astype(matmul_dtype).astype(jnp.float32)

    z = x.astype(jnp.float32)
    log_det = jnp.zeros((x.shape[0],), jnp.float32)
    for i in range(NUM_FLOWS):
        xa, xb = z[:, :dh], z[:, dh:]
        hs = leaky(lin(xa, ws1[i], bs1[i]))
        hs = leaky(lin(hs, ws2[i], bs2[i]))
        s = jnp.tanh(lin(hs, ws3[i], bs3[i]))
        ht = leaky(lin(xa, wt1[i], bt1[i]))
        ht = leaky(lin(ht, wt2[i], bt2[i]))
        t = lin(ht, wt3[i], bt3[i])
        yb = (xb - t) * jnp.exp(-s)
        z = jnp.flip(jnp.concatenate([xa, yb], axis=1), axis=1)
        log_det = log_det - jnp.sum(s, axis=1)
    log_prior = -0.5 * jnp.sum(z * z, axis=1) - 0.5 * D * math.log(2.0 * math.pi)
    return log_prior + log_det


# ---------------------------------- main -------------------------------------
if __name__ == "__main__":
    key = jax.random.PRNGKey(0)
    kx, kp = jax.random.split(key)
    x = jax.random.normal(kx, (B, D), dtype=jnp.float32)
    params = make_params(kp)
    packed = prepare_packed_params(params)   # host-side, once

    out = realnvp_forward(x, packed)
    out = jax.block_until_ready(out)
    assert out.shape == (B,)

    # Tight check: reference with identical arithmetic (bf16 MXU feeds,
    # f32 accumulate / elementwise) -> verifies the kernel logic.
    ref_bf16 = realnvp_reference(x, params, matmul_dtype=jnp.bfloat16)
    assert jnp.allclose(out, ref_bf16, atol=2e-2, rtol=2e-3), (out, ref_bf16)

    # Semantics check vs. the literal f32 translation of the PyTorch module;
    # tolerance loosened only to cover the bf16 MXU feeds (per perf review).
    ref_f32 = realnvp_reference(x, params, matmul_dtype=jnp.float32)
    assert jnp.allclose(out, ref_f32, atol=5e-1, rtol=5e-2), (out, ref_f32)

    print("KERNEL_OK")
</pallas_src>

<mosaic_0001>
module attributes {stable_mosaic.version = 11 : i64} {
  func.func @_realnvp_kernel(%arg0: memref<8x16xf32, #tpu.memory_space<vmem>>, %arg1: memref<4x176x64xbf16, #tpu.memory_space<vmem>>, %arg2: memref<8x1xf32, #tpu.memory_space<vmem>>) attributes {dimension_semantics = [], scalar_prefetch = 0 : i64, scratch_operands = 0 : i64, tpu.core_type = #tpu.core_type<tc>} {
    %c0 = arith.constant 0 : index
    %c0_0 = arith.constant 0 : index
    %0 = vector.load %arg0[%c0, %c0_0] : memref<8x16xf32, #tpu.memory_space<vmem>>, vector<8x16xf32>
    %1 = vector.extract_strided_slice %0 {offsets = [0, 0], sizes = [8, 8], strides = [1, 1]} : vector<8x16xf32> to vector<8x8xf32>
    %2 = vector.extract_strided_slice %0 {offsets = [0, 8], sizes = [8, 8], strides = [1, 1]} : vector<8x16xf32> to vector<8x8xf32>
    %cst = arith.constant 0.000000e+00 : f32
    %3 = vector.broadcast %cst : f32 to vector<8x8xf32>
    %c0_1 = arith.constant 0 : index
    %c0_2 = arith.constant 0 : index
    %c0_3 = arith.constant 0 : index
    %4 = vector.load %arg1[%c0_1, %c0_2, %c0_3] : memref<4x176x64xbf16, #tpu.memory_space<vmem>>, vector<1x8x64xbf16>
    %5 = vector.shape_cast %4 : vector<1x8x64xbf16> to vector<8x64xbf16>
    %c0_4 = arith.constant 0 : index
    %c8 = arith.constant 8 : index
    %c0_5 = arith.constant 0 : index
    %6 = vector.load %arg1[%c0_4, %c8, %c0_5] : memref<4x176x64xbf16, #tpu.memory_space<vmem>>, vector<1x1x64xbf16>
    %7 = vector.shape_cast %6 : vector<1x1x64xbf16> to vector<1x64xbf16>
    %8 = arith.extf %7 : vector<1x64xbf16> to vector<1x64xf32>
    %c0_6 = arith.constant 0 : index
    %c16 = arith.constant 16 : index
    %c0_7 = arith.constant 0 : index
    %9 = vector.load %arg1[%c0_6, %c16, %c0_7] : memref<4x176x64xbf16, #tpu.memory_space<vmem>>, vector<1x64x64xbf16>
    %10 = vector.shape_cast %9 : vector<1x64x64xbf16> to vector<64x64xbf16>
    %c0_8 = arith.constant 0 : index
    %c80 = arith.constant 80 : index
    %c0_9 = arith.constant 0 : index
    %11 = vector.load %arg1[%c0_8, %c80, %c0_9] : memref<4x176x64xbf16, #tpu.memory_space<vmem>>, vector<1x1x64xbf16>
    %12 = vector.shape_cast %11 : vector<1x1x64xbf16> to vector<1x64xbf16>
    %13 = arith.extf %12 : vector<1x64xbf16> to vector<1x64xf32>
    %c0_10 = arith.constant 0 : index
    %c96 = arith.constant 96 : index
    %c0_11 = arith.constant 0 : index
    %14 = vector.load %arg1[%c0_10, %c96, %c0_11] : memref<4x176x64xbf16, #tpu.memory_space<vmem>>, vector<1x64x64xbf16>
    %15 = vector.shape_cast %14 : vector<1x64x64xbf16> to vector<64x64xbf16>
    %c0_12 = arith.constant 0 : index
    %c160 = arith.constant 160 : index
    %c0_13 = arith.constant 0 : index
    %16 = vector.load %arg1[%c0_12, %c160, %c0_13] : memref<4x176x64xbf16, #tpu.memory_space<vmem>>, vector<1x1x64xbf16>
    %17 = vector.shape_cast %16 : vector<1x1x64xbf16> to vector<1x64xbf16>
    %18 = arith.extf %17 : vector<1x64xbf16> to vector<1x64xf32>
    %19 = arith.truncf %1 : vector<8x8xf32> to vector<8x8xbf16>
    %cst_14 = arith.constant dense<0.000000e+00> : vector<8x64xf32>
    %20 = tpu.matmul %19, %5, %cst_14 {dimension_numbers = #tpu.dot_dimension_numbers<[1], [0], [0], [1], [0, 0, 1, 1], [], []>} : vector<8x8xbf16>, vector<8x64xbf16>, vector<8x64xf32> -> vector<8x64xf32>
    %21 = vector.broadcast %8 : vector<1x64xf32> to vector<8x64xf32>
    %22 = arith.addf %20, %21 : vector<8x64xf32>
    %cst_15 = arith.constant 0.00999999977 : f32
    %23 = vector.broadcast %cst_15 : f32 to vector<8x64xf32>
    %24 = arith.mulf %23, %22 : vector<8x64xf32>
    %25 = arith.maximumf %22, %24 : vector<8x64xf32>
    %26 = arith.truncf %25 : vector<8x64xf32> to vector<8x64xbf16>
    %cst_16 = arith.constant dense<0.000000e+00> : vector<8x64xf32>
    %27 = tpu.matmul %26, %10, %cst_16 {dimension_numbers = #tpu.dot_dimension_numbers<[1], [0], [0], [1], [0, 0, 1, 1], [], []>} : vector<8x64xbf16>, vector<64x64xbf16>, vector<8x64xf32> -> vector<8x64xf32>
    %28 = vector.broadcast %13 : vector<1x64xf32> to vector<8x64xf32>
    %29 = arith.addf %27, %28 : vector<8x64xf32>
    %cst_17 = arith.constant 0.00999999977 : f32
    %30 = vector.broadcast %cst_17 : f32 to vector<8x64xf32>
    %31 = arith.mulf %30, %29 : vector<8x64xf32>
    %32 = arith.maximumf %29, %31 : vector<8x64xf32>
    %33 = arith.truncf %32 : vector<8x64xf32> to vector<8x64xbf16>
    %cst_18 = arith.constant dense<0.000000e+00> : vector<8x64xf32>
    %34 = tpu.matmul %33, %15, %cst_18 {dimension_numbers = #tpu.dot_dimension_numbers<[1], [0], [0], [1], [0, 0, 1, 1], [], []>} : vector<8x64xbf16>, vector<64x64xbf16>, vector<8x64xf32> -> vector<8x64xf32>
    %35 = vector.broadcast %18 : vector<1x64xf32> to vector<8x64xf32>
    %36 = arith.addf %34, %35 : vector<8x64xf32>
    %37 = vector.extract_strided_slice %36 {offsets = [0, 0], sizes = [8, 8], strides = [1, 1]} : vector<8x64xf32> to vector<8x8xf32>
    %38 = math.tanh %37 : vector<8x8xf32>
    %39 = vector.extract_strided_slice %36 {offsets = [0, 8], sizes = [8, 8], strides = [1, 1]} : vector<8x64xf32> to vector<8x8xf32>
    %40 = arith.subf %2, %39 : vector<8x8xf32>
    %cst_19 = arith.constant 0.000000e+00 : f32
    %41 = vector.broadcast %cst_19 : f32 to vector<8x8xf32>
    %42 = arith.subf %41, %38 : vector<8x8xf32>
    %43 = math.exp %42 : vector<8x8xf32>
    %44 = arith.mulf %40, %43 : vector<8x8xf32>
    %45 = arith.addf %3, %38 : vector<8x8xf32>
    %c1 = arith.constant 1 : index
    %c0_20 = arith.constant 0 : index
    %c0_21 = arith.constant 0 : index
    %46 = vector.load %arg1[%c1, %c0_20, %c0_21] : memref<4x176x64xbf16, #tpu.memory_space<vmem>>, vector<1x8x64xbf16>
    %47 = vector.shape_cast %46 : vector<1x8x64xbf16> to vector<8x64xbf16>
    %c1_22 = arith.constant 1 : index
    %c8_23 = arith.constant 8 : index
    %c0_24 = arith.constant 0 : index
    %48 = vector.load %arg1[%c1_22, %c8_23, %c0_24] : memref<4x176x64xbf16, #tpu.memory_space<vmem>>, vector<1x1x64xbf16>
    %49 = vector.shape_cast %48 : vector<1x1x64xbf16> to vector<1x64xbf16>
    %50 = arith.extf %49 : vector<1x64xbf16> to vector<1x64xf32>
    %c1_25 = arith.constant 1 : index
    %c16_26 = arith.constant 16 : index
    %c0_27 = arith.constant 0 : index
    %51 = vector.load %arg1[%c1_25, %c16_26, %c0_27] : memref<4x176x64xbf16, #tpu.memory_space<vmem>>, vector<1x64x64xbf16>
    %52 = vector.shape_cast %51 : vector<1x64x64xbf16> to vector<64x64xbf16>
    %c1_28 = arith.constant 1 : index
    %c80_29 = arith.constant 80 : index
    %c0_30 = arith.constant 0 : index
    %53 = vector.load %arg1[%c1_28, %c80_29, %c0_30] : memref<4x176x64xbf16, #tpu.memory_space<vmem>>, vector<1x1x64xbf16>
    %54 = vector.shape_cast %53 : vector<1x1x64xbf16> to vector<1x64xbf16>
    %55 = arith.extf %54 : vector<1x64xbf16> to vector<1x64xf32>
    %c1_31 = arith.constant 1 : index
    %c96_32 = arith.constant 96 : index
    %c0_33 = arith.constant 0 : index
    %56 = vector.load %arg1[%c1_31, %c96_32, %c0_33] : memref<4x176x64xbf16, #tpu.memory_space<vmem>>, vector<1x64x64xbf16>
    %57 = vector.shape_cast %56 : vector<1x64x64xbf16> to vector<64x64xbf16>
    %c1_34 = arith.constant 1 : index
    %c160_35 = arith.constant 160 : index
    %c0_36 = arith.constant 0 : index
    %58 = vector.load %arg1[%c1_34, %c160_35, %c0_36] : memref<4x176x64xbf16, #tpu.memory_space<vmem>>, vector<1x1x64xbf16>
    %59 = vector.shape_cast %58 : vector<1x1x64xbf16> to vector<1x64xbf16>
    %60 = arith.extf %59 : vector<1x64xbf16> to vector<1x64xf32>
    %61 = arith.truncf %44 : vector<8x8xf32> to vector<8x8xbf16>
    %cst_37 = arith.constant dense<0.000000e+00> : vector<8x64xf32>
    %62 = tpu.matmul %61, %47, %cst_37 {dimension_numbers = #tpu.dot_dimension_numbers<[1], [0], [0], [1], [0, 0, 1, 1], [], []>} : vector<8x8xbf16>, vector<8x64xbf16>, vector<8x64xf32> -> vector<8x64xf32>
    %63 = vector.broadcast %50 : vector<1x64xf32> to vector<8x64xf32>
    %64 = arith.addf %62, %63 : vector<8x64xf32>
    %cst_38 = arith.constant 0.00999999977 : f32
    %65 = vector.broadcast %cst_38 : f32 to vector<8x64xf32>
    %66 = arith.mulf %65, %64 : vector<8x64xf32>
    %67 = arith.maximumf %64, %66 : vector<8x64xf32>
    %68 = arith.truncf %67 : vector<8x64xf32> to vector<8x64xbf16>
    %cst_39 = arith.constant dense<0.000000e+00> : vector<8x64xf32>
    %69 = tpu.matmul %68, %52, %cst_39 {dimension_numbers = #tpu.dot_dimension_numbers<[1], [0], [0], [1], [0, 0, 1, 1], [], []>} : vector<8x64xbf16>, vector<64x64xbf16>, vector<8x64xf32> -> vector<8x64xf32>
    %70 = vector.broadcast %55 : vector<1x64xf32> to vector<8x64xf32>
    %71 = arith.addf %69, %70 : vector<8x64xf32>
    %cst_40 = arith.constant 0.00999999977 : f32
    %72 = vector.broadcast %cst_40 : f32 to vector<8x64xf32>
    %73 = arith.mulf %72, %71 : vector<8x64xf32>
    %74 = arith.maximumf %71, %73 : vector<8x64xf32>
    %75 = arith.truncf %74 : vector<8x64xf32> to vector<8x64xbf16>
    %cst_41 = arith.constant dense<0.000000e+00> : vector<8x64xf32>
    %76 = tpu.matmul %75, %57, %cst_41 {dimension_numbers = #tpu.dot_dimension_numbers<[1], [0], [0], [1], [0, 0, 1, 1], [], []>} : vector<8x64xbf16>, vector<64x64xbf16>, vector<8x64xf32> -> vector<8x64xf32>
    %77 = vector.broadcast %60 : vector<1x64xf32> to vector<8x64xf32>
    %78 = arith.addf %76, %77 : vector<8x64xf32>
    %79 = vector.extract_strided_slice %78 {offsets = [0, 0], sizes = [8, 8], strides = [1, 1]} : vector<8x64xf32> to vector<8x8xf32>
    %80 = math.tanh %79 : vector<8x8xf32>
    %81 = vector.extract_strided_slice %78 {offsets = [0, 8], sizes = [8, 8], strides = [1, 1]} : vector<8x64xf32> to vector<8x8xf32>
    %82 = arith.subf %1, %81 : vector<8x8xf32>
    %cst_42 = arith.constant 0.000000e+00 : f32
    %83 = vector.broadcast %cst_42 : f32 to vector<8x8xf32>
    %84 = arith.subf %83, %80 : vector<8x8xf32>
    %85 = math.exp %84 : vector<8x8xf32>
    %86 = arith.mulf %82, %85 : vector<8x8xf32>
    %87 = arith.addf %45, %80 : vector<8x8xf32>
    %c2 = arith.constant 2 : index
    %c0_43 = arith.constant 0 : index
    %c0_44 = arith.constant 0 : index
    %88 = vector.load %arg1[%c2, %c0_43, %c0_44] : memref<4x176x64xbf16, #tpu.memory_space<vmem>>, vector<1x8x64xbf16>
    %89 = vector.shape_cast %88 : vector<1x8x64xbf16> to vector<8x64xbf16>
    %c2_45 = arith.constant 2 : index
    %c8_46 = arith.constant 8 : index
    %c0_47 = arith.constant 0 : index
    %90 = vector.load %arg1[%c2_45, %c8_46, %c0_47] : memref<4x176x64xbf16, #tpu.memory_space<vmem>>, vector<1x1x64xbf16>
    %91 = vector.shape_cast %90 : vector<1x1x64xbf16> to vector<1x64xbf16>
    %92 = arith.extf %91 : vector<1x64xbf16> to vector<1x64xf32>
    %c2_48 = arith.constant 2 : index
    %c16_49 = arith.constant 16 : index
    %c0_50 = arith.constant 0 : index
    %93 = vector.load %arg1[%c2_48, %c16_49, %c0_50] : memref<4x176x64xbf16, #tpu.memory_space<vmem>>, vector<1x64x64xbf16>
    %94 = vector.shape_cast %93 : vector<1x64x64xbf16> to vector<64x64xbf16>
    %c2_51 = arith.constant 2 : index
    %c80_52 = arith.constant 80 : index
    %c0_53 = arith.constant 0 : index
    %95 = vector.load %arg1[%c2_51, %c80_52, %c0_53] : memref<4x176x64xbf16, #tpu.memory_space<vmem>>, vector<1x1x64xbf16>
    %96 = vector.shape_cast %95 : vector<1x1x64xbf16> to vector<1x64xbf16>
    %97 = arith.extf %96 : vector<1x64xbf16> to vector<1x64xf32>
    %c2_54 = arith.constant 2 : index
    %c96_55 = arith.constant 96 : index
    %c0_56 = arith.constant 0 : index
    %98 = vector.load %arg1[%c2_54, %c96_55, %c0_56] : memref<4x176x64xbf16, #tpu.memory_space<vmem>>, vector<1x64x64xbf16>
    %99 = vector.shape_cast %98 : vector<1x64x64xbf16> to vector<64x64xbf16>
    %c2_57 = arith.constant 2 : index
    %c160_58 = arith.constant 160 : index
    %c0_59 = arith.constant 0 : index
    %100 = vector.load %arg1[%c2_57, %c160_58, %c0_59] : memref<4x176x64xbf16, #tpu.memory_space<vmem>>, vector<1x1x64xbf16>
    %101 = vector.shape_cast %100 : vector<1x1x64xbf16> to vector<1x64xbf16>
    %102 = arith.extf %101 : vector<1x64xbf16> to vector<1x64xf32>
    %103 = arith.truncf %86 : vector<8x8xf32> to vector<8x8xbf16>
    %cst_60 = arith.constant dense<0.000000e+00> : vector<8x64xf32>
    %104 = tpu.matmul %103, %89, %cst_60 {dimension_numbers = #tpu.dot_dimension_numbers<[1], [0], [0], [1], [0, 0, 1, 1], [], []>} : vector<8x8xbf16>, vector<8x64xbf16>, vector<8x64xf32> -> vector<8x64xf32>
    %105 = vector.broadcast %92 : vector<1x64xf32> to vector<8x64xf32>
    %106 = arith.addf %104, %105 : vector<8x64xf32>
    %cst_61 = arith.constant 0.00999999977 : f32
    %107 = vector.broadcast %cst_61 : f32 to vector<8x64xf32>
    %108 = arith.mulf %107, %106 : vector<8x64xf32>
    %109 = arith.maximumf %106, %108 : vector<8x64xf32>
    %110 = arith.truncf %109 : vector<8x64xf32> to vector<8x64xbf16>
    %cst_62 = arith.constant dense<0.000000e+00> : vector<8x64xf32>
    %111 = tpu.matmul %110, %94, %cst_62 {dimension_numbers = #tpu.dot_dimension_numbers<[1], [0], [0], [1], [0, 0, 1, 1], [], []>} : vector<8x64xbf16>, vector<64x64xbf16>, vector<8x64xf32> -> vector<8x64xf32>
    %112 = vector.broadcast %97 : vector<1x64xf32> to vector<8x64xf32>
    %113 = arith.addf %111, %112 : vector<8x64xf32>
    %cst_63 = arith.constant 0.00999999977 : f32
    %114 = vector.broadcast %cst_63 : f32 to vector<8x64xf32>
    %115 = arith.mulf %114, %113 : vector<8x64xf32>
    %116 = arith.maximumf %113, %115 : vector<8x64xf32>
    %117 = arith.truncf %116 : vector<8x64xf32> to vector<8x64xbf16>
    %cst_64 = arith.constant dense<0.000000e+00> : vector<8x64xf32>
    %118 = tpu.matmul %117, %99, %cst_64 {dimension_numbers = #tpu.dot_dimension_numbers<[1], [0], [0], [1], [0, 0, 1, 1], [], []>} : vector<8x64xbf16>, vector<64x64xbf16>, vector<8x64xf32> -> vector<8x64xf32>
    %119 = vector.broadcast %102 : vector<1x64xf32> to vector<8x64xf32>
    %120 = arith.addf %118, %119 : vector<8x64xf32>
    %121 = vector.extract_strided_slice %120 {offsets = [0, 0], sizes = [8, 8], strides = [1, 1]} : vector<8x64xf32> to vector<8x8xf32>
    %122 = math.tanh %121 : vector<8x8xf32>
    %123 = vector.extract_strided_slice %120 {offsets = [0, 8], sizes = [8, 8], strides = [1, 1]} : vector<8x64xf32> to vector<8x8xf32>
    %124 = arith.subf %44, %123 : vector<8x8xf32>
    %cst_65 = arith.constant 0.000000e+00 : f32
    %125 = vector.broadcast %cst_65 : f32 to vector<8x8xf32>
    %126 = arith.subf %125, %122 : vector<8x8xf32>
    %127 = math.exp %126 : vector<8x8xf32>
    %128 = arith.mulf %124, %127 : vector<8x8xf32>
    %129 = arith.addf %87, %122 : vector<8x8xf32>
    %c3 = arith.constant 3 : index
    %c0_66 = arith.constant 0 : index
    %c0_67 = arith.constant 0 : index
    %130 = vector.load %arg1[%c3, %c0_66, %c0_67] : memref<4x176x64xbf16, #tpu.memory_space<vmem>>, vector<1x8x64xbf16>
    %131 = vector.shape_cast %130 : vector<1x8x64xbf16> to vector<8x64xbf16>
    %c3_68 = arith.constant 3 : index
    %c8_69 = arith.constant 8 : index
    %c0_70 = arith.constant 0 : index
    %132 = vector.load %arg1[%c3_68, %c8_69, %c0_70] : memref<4x176x64xbf16, #tpu.memory_space<vmem>>, vector<1x1x64xbf16>
    %133 = vector.shape_cast %132 : vector<1x1x64xbf16> to vector<1x64xbf16>
    %134 = arith.extf %133 : vector<1x64xbf16> to vector<1x64xf32>
    %c3_71 = arith.constant 3 : index
    %c16_72 = arith.constant 16 : index
    %c0_73 = arith.constant 0 : index
    %135 = vector.load %arg1[%c3_71, %c16_72, %c0_73] : memref<4x176x64xbf16, #tpu.memory_space<vmem>>, vector<1x64x64xbf16>
    %136 = vector.shape_cast %135 : vector<1x64x64xbf16> to vector<64x64xbf16>
    %c3_74 = arith.constant 3 : index
    %c80_75 = arith.constant 80 : index
    %c0_76 = arith.constant 0 : index
    %137 = vector.load %arg1[%c3_74, %c80_75, %c0_76] : memref<4x176x64xbf16, #tpu.memory_space<vmem>>, vector<1x1x64xbf16>
    %138 = vector.shape_cast %137 : vector<1x1x64xbf16> to vector<1x64xbf16>
    %139 = arith.extf %138 : vector<1x64xbf16> to vector<1x64xf32>
    %c3_77 = arith.constant 3 : index
    %c96_78 = arith.constant 96 : index
    %c0_79 = arith.constant 0 : index
    %140 = vector.load %arg1[%c3_77, %c96_78, %c0_79] : memref<4x176x64xbf16, #tpu.memory_space<vmem>>, vector<1x64x64xbf16>
    %141 = vector.shape_cast %140 : vector<1x64x64xbf16> to vector<64x64xbf16>
    %c3_80 = arith.constant 3 : index
    %c160_81 = arith.constant 160 : index
    %c0_82 = arith.constant 0 : index
    %142 = vector.load %arg1[%c3_80, %c160_81, %c0_82] : memref<4x176x64xbf16, #tpu.memory_space<vmem>>, vector<1x1x64xbf16>
    %143 = vector.shape_cast %142 : vector<1x1x64xbf16> to vector<1x64xbf16>
    %144 = arith.extf %143 : vector<1x64xbf16> to vector<1x64xf32>
    %145 = arith.truncf %128 : vector<8x8xf32> to vector<8x8xbf16>
    %cst_83 = arith.constant dense<0.000000e+00> : vector<8x64xf32>
    %146 = tpu.matmul %145, %131, %cst_83 {dimension_numbers = #tpu.dot_dimension_numbers<[1], [0], [0], [1], [0, 0, 1, 1], [], []>} : vector<8x8xbf16>, vector<8x64xbf16>, vector<8x64xf32> -> vector<8x64xf32>
    %147 = vector.broadcast %134 : vector<1x64xf32> to vector<8x64xf32>
    %148 = arith.addf %146, %147 : vector<8x64xf32>
    %cst_84 = arith.constant 0.00999999977 : f32
    %149 = vector.broadcast %cst_84 : f32 to vector<8x64xf32>
    %150 = arith.mulf %149, %148 : vector<8x64xf32>
    %151 = arith.maximumf %148, %150 : vector<8x64xf32>
    %152 = arith.truncf %151 : vector<8x64xf32> to vector<8x64xbf16>
    %cst_85 = arith.constant dense<0.000000e+00> : vector<8x64xf32>
    %153 = tpu.matmul %152, %136, %cst_85 {dimension_numbers = #tpu.dot_dimension_numbers<[1], [0], [0], [1], [0, 0, 1, 1], [], []>} : vector<8x64xbf16>, vector<64x64xbf16>, vector<8x64xf32> -> vector<8x64xf32>
    %154 = vector.broadcast %139 : vector<1x64xf32> to vector<8x64xf32>
    %155 = arith.addf %153, %154 : vector<8x64xf32>
    %cst_86 = arith.constant 0.00999999977 : f32
    %156 = vector.broadcast %cst_86 : f32 to vector<8x64xf32>
    %157 = arith.mulf %156, %155 : vector<8x64xf32>
    %158 = arith.maximumf %155, %157 : vector<8x64xf32>
    %159 = arith.truncf %158 : vector<8x64xf32> to vector<8x64xbf16>
    %cst_87 = arith.constant dense<0.000000e+00> : vector<8x64xf32>
    %160 = tpu.matmul %159, %141, %cst_87 {dimension_numbers = #tpu.dot_dimension_numbers<[1], [0], [0], [1], [0, 0, 1, 1], [], []>} : vector<8x64xbf16>, vector<64x64xbf16>, vector<8x64xf32> -> vector<8x64xf32>
    %161 = vector.broadcast %144 : vector<1x64xf32> to vector<8x64xf32>
    %162 = arith.addf %160, %161 : vector<8x64xf32>
    %163 = vector.extract_strided_slice %162 {offsets = [0, 0], sizes = [8, 8], strides = [1, 1]} : vector<8x64xf32> to vector<8x8xf32>
    %164 = math.tanh %163 : vector<8x8xf32>
    %165 = vector.extract_strided_slice %162 {offsets = [0, 8], sizes = [8, 8], strides = [1, 1]} : vector<8x64xf32> to vector<8x8xf32>
    %166 = arith.subf %86, %165 : vector<8x8xf32>
    %cst_88 = arith.constant 0.000000e+00 : f32
    %167 = vector.broadcast %cst_88 : f32 to vector<8x8xf32>
    %168 = arith.subf %167, %164 : vector<8x8xf32>
    %169 = math.exp %168 : vector<8x8xf32>
    %170 = arith.mulf %166, %169 : vector<8x8xf32>
    %171 = arith.addf %129, %164 : vector<8x8xf32>
    %172 = arith.mulf %170, %170 : vector<8x8xf32>
    %173 = arith.mulf %128, %128 : vector<8x8xf32>
    %174 = arith.addf %172, %173 : vector<8x8xf32>
    %cst_89 = arith.constant -5.000000e-01 : f32
    %175 = vector.broadcast %cst_89 : f32 to vector<8x8xf32>
    %176 = arith.mulf %175, %174 : vector<8x8xf32>
    %177 = arith.subf %176, %171 : vector<8x8xf32>
    %cst_90 = arith.constant dense<0.000000e+00> : vector<8xf32>
    %178 = vector.multi_reduction <add>, %177, %cst_90 [1] : vector<8x8xf32> to vector<8xf32>
    %179 = vector.shape_cast %178 : vector<8xf32> to vector<8x1xf32>
    %cst_91 = arith.constant 14.7030163 : f32
    %180 = vector.broadcast %cst_91 : f32 to vector<8x1xf32>
    %181 = arith.subf %179, %180 : vector<8x1xf32>
    %c0_92 = arith.constant 0 : index
    %c0_93 = arith.constant 0 : index
    %182 = vector.load %arg2[%c0_92, %c0_93] : memref<8x1xf32, #tpu.memory_space<vmem>>, vector<8x1xf32>
    tpu.vector_store %arg2[%c0_92, %c0_93], %181 {strides = array<i32>} : memref<8x1xf32, #tpu.memory_space<vmem>>, vector<8x1xf32>,
    return
  }
}

</mosaic_0001>

<llo_original>
// kernel: realnvp_forward.1
$region0: #{realnvp_forward.1}
  #allocation0 [shape = 'u32[]', space=smem, size = 0x4, offset = 0x4, fixed_abs, tag = 'smem constant byte address 0x4 - core index']
  #allocation1 [shape = 'u32[72,128]{1,0:T(1,128)}', space=vmem, size = 0x9000, scoped, tag = 'internal scratch']
  %s0 = inlined_call_operand.vmem [shape: f32[8,16], index: 0, kind: input, shape index: {}]
  %s1 = inlined_call_operand.vmem [shape: bf16[4,176,64], index: 1, kind: input, shape index: {}]
  %s2 = inlined_call_operand.vmem [shape: f32[8,1], index: 2, kind: output, shape index: {}]
  %s3 = sld [smem:[#allocation0]]
  $region18: #{realnvp_forward.1} parent=0
    _
  %s5 = ssub.s32 1, %s3
  %s6 = scalar_select 0, %s5, %s3
  // Predicated region
  $region2: #{realnvp_forward.1} parent=0 // pred_check
    _
  $region3: #{realnvp_forward.1} parent=0 // pred_check_branch
    %8 = sbr.rel (0) target = $region5
  $region4: #{realnvp_forward.1} parent=0 // pred_region
    _
  $region5: #{realnvp_forward.1} parent=0 // pred_fallthru
    _
  // Predicated region
  $region6: #{realnvp_forward.1} parent=0 // pred_check
    _
  $region7: #{realnvp_forward.1} parent=0 // pred_check_branch
    %10 = sbr.rel (0) target = $region9
  $region8: #{realnvp_forward.1} parent=0 // pred_region
    _
  $region9: #{realnvp_forward.1} parent=0 // pred_fallthru
    _
  %v12 = vld [vmem:[%s0] sm:$0xff]
  %v13 = vld [vmem:[%s1] sm:$0xf]
  %v14 = vld [vmem:[%s1 + $0x4] sm:$0x1]
  %v15 = vunpack.c.l.bf16 %v14
  %v16 = vld [vmem:[%s1 + $0x8] sm:$0xf]
  %v17 = vld [vmem:[%s1 + $0xc] sm:$0xf]
  %v18 = vld [vmem:[%s1 + $0x10] sm:$0xf]
  %v19 = vld [vmem:[%s1 + $0x14] sm:$0xf]
  %v20 = vld [vmem:[%s1 + $0x18] sm:$0xf]
  %v21 = vld [vmem:[%s1 + $0x1c] sm:$0xf]
  %v22 = vld [vmem:[%s1 + $0x20] sm:$0xf]
  %v23 = vld [vmem:[%s1 + $0x24] sm:$0xf]
  %v24 = vld [vmem:[%s1 + $0x28] sm:$0x1]
  %v25 = vunpack.c.l.bf16 %v24
  %v26 = vld [vmem:[%s1 + $0x30] sm:$0xf]
  %v27 = vld [vmem:[%s1 + $0x34] sm:$0xf]
  %v28 = vld [vmem:[%s1 + $0x38] sm:$0xf]
  %v29 = vld [vmem:[%s1 + $0x3c] sm:$0xf]
  %v30 = vld [vmem:[%s1 + $0x40] sm:$0xf]
  %v31 = vld [vmem:[%s1 + $0x44] sm:$0xf]
  %v32 = vld [vmem:[%s1 + $0x48] sm:$0xf]
  %v33 = vld [vmem:[%s1 + $0x4c] sm:$0xf]
  %v34 = vld [vmem:[%s1 + $0x50] sm:$0x1]
  %v35 = vunpack.c.l.bf16 %v34
  %v36 = vpack.c.bf16 %v12, %v12
  %v37 = vperm.slane %v15, 0
  %vm38 = vcmask 64512
  %v40 = vsel %vm38, %v36, 0
  %vm42 = vcmask 1043456
  %v44 = vsel %vm42, %v13, 0
  %46 = vmatpush.bf16.msra.mxu0 0
  %47 = vmatpush.bf16.msra.mxu0 0
  %48 = vmatpush.bf16.msra.mxu0 0
  %49 = vmatpush.bf16.msra.mxu0 0
  %50 = vmatpush.bf16.msra.mxu0 0
  %51 = vmatpush.bf16.msra.mxu0 0
  %52 = vmatpush.bf16.msra.mxu0 0
  %53 = vmatpush.bf16.msra.mxu0 %v44
  %54 = vmatmul.bf16.gmra.mxu0 %v40
  %v55 = vpop.f32.mrf.mxu0
  %v56 = vadd.f32 %v37, %v55
  %v57 = vpop.f32.mrf.mxu0
  %58 = vdwg.mxu0
  %v59 = vmul.f32 %v56, 0.01
  %v60 = vmax.f32 %v56, %v59
  %v61 = vpack.c.bf16 %v60, %v60
  %v62 = vperm.slane %v25, 0
  %v71 = vunpack.c.l.b16 %v16
  %v72 = vunpack.c.l.b16 %v17
  %v73 = vunpack.c.l.b16 %v18
  %v74 = vunpack.c.l.b16 %v19
  %v75 = vunpack.c.l.b16 %v20
  %v76 = vunpack.c.l.b16 %v21
  %v77 = vunpack.c.l.b16 %v22
  %v78 = vunpack.c.l.b16 %v23
  %v79 = vpack.c.b16 %v72, %v71
  %v80 = vpack.c.b16 %v74, %v73
  %v81 = vpack.c.b16 %v76, %v75
  %v82 = vpack.c.b16 %v78, %v77
  %vm87 = vcmask 523264
  %v89 = vsel %vm87, %v61, 0
  %91 = vmatpush.bf16.msra.mxu0 0
  %92 = vmatpush.bf16.msra.mxu0 0
  %93 = vmatpush.bf16.msra.mxu0 0
  %94 = vmatpush.bf16.msra.mxu0 0
  %95 = vmatpush.bf16.msra.mxu0 %v82
  %96 = vmatpush.bf16.msra.mxu0 %v81
  %97 = vmatpush.bf16.msra.mxu0 %v80
  %98 = vmatpush.bf16.msra.mxu0 %v79
  %99 = vmatmul.bf16.gmra.mxu0 %v89
  %v100 = vpop.f32.mrf.mxu0
  %v101 = vadd.f32 %v62, %v100
  %v102 = vpop.f32.mrf.mxu0
  %103 = vdwg.mxu0
  %v104 = vmul.f32 %v101, 0.01
  %v105 = vmax.f32 %v101, %v104
  %v106 = vpack.c.bf16 %v105, %v105
  %v107 = vperm.slane %v35, 0
  %v116 = vunpack.c.l.b16 %v26
  %v117 = vunpack.c.l.b16 %v27
  %v118 = vunpack.c.l.b16 %v28
  %v119 = vunpack.c.l.b16 %v29
  %v120 = vunpack.c.l.b16 %v30
  %v121 = vunpack.c.l.b16 %v31
  %v122 = vunpack.c.l.b16 %v32
  %v123 = vunpack.c.l.b16 %v33
  %v124 = vpack.c.b16 %v117, %v116
  %v125 = vpack.c.b16 %v119, %v118
  %v126 = vpack.c.b16 %v121, %v120
  %v127 = vpack.c.b16 %v123, %v122
  %v133 = vsel %vm87, %v106, 0
  %135 = vmatpush.bf16.msra.mxu0 0
  %136 = vmatpush.bf16.msra.mxu0 0
  %137 = vmatpush.bf16.msra.mxu0 0
  %138 = vmatpush.bf16.msra.mxu0 0
  %139 = vmatpush.bf16.msra.mxu0 %v127
  %140 = vmatpush.bf16.msra.mxu0 %v126
  %141 = vmatpush.bf16.msra.mxu0 %v125
  %142 = vmatpush.bf16.msra.mxu0 %v124
  %143 = vmatmul.bf16.gmra.mxu0 %v133
  %v144 = vpop.f32.mrf.mxu0
  %v145 = vadd.f32 %v107, %v144
  %v146 = vpop.f32.mrf.mxu0
  %147 = vdwg.mxu0
  %v148 = vtanh.pop %v145
  %v149 = vsub.f32 %v12, %v145
  %v150 = vsub.f32 0.0, %v148
  %v151 = vmul.f32 %v150, 1.442695
  %v152 = vpow.pop %v151
  %154 = vrot.lane.b32.xlu0 %v152, 8
  %v155 = vpop.permute.xlu0 %154
  %v157 = vmul.f32 %v149, %v155
  %v158 = vadd.f32 %v148, 0.0
  %s159 = scalar_lea.vmem %s1, 88
  %v160 = vld [vmem:[%s159] sm:$0xf]
  %v161 = vld [vmem:[%s159 + $0x4] sm:$0x1]
  %v162 = vunpack.c.l.bf16 %v161
  %v163 = vld [vmem:[%s159 + $0x8] sm:$0xf]
  %v164 = vld [vmem:[%s159 + $0xc] sm:$0xf]
  %v165 = vld [vmem:[%s159 + $0x10] sm:$0xf]
  %v166 = vld [vmem:[%s159 + $0x14] sm:$0xf]
  %v167 = vld [vmem:[%s159 + $0x18] sm:$0xf]
  %v168 = vld [vmem:[%s159 + $0x1c] sm:$0xf]
  %v169 = vld [vmem:[%s159 + $0x20] sm:$0xf]
  %v170 = vld [vmem:[%s159 + $0x24] sm:$0xf]
  %v171 = vld [vmem:[%s159 + $0x28] sm:$0x1]
  %v172 = vunpack.c.l.bf16 %v171
  %v173 = vld [vmem:[%s159 + $0x30] sm:$0xf]
  %v174 = vld [vmem:[%s159 + $0x34] sm:$0xf]
  %v175 = vld [vmem:[%s159 + $0x38] sm:$0xf]
  %v176 = vld [vmem:[%s159 + $0x3c] sm:$0xf]
  %v177 = vld [vmem:[%s159 + $0x40] sm:$0xf]
  %v178 = vld [vmem:[%s159 + $0x44] sm:$0xf]
  %v179 = vld [vmem:[%s159 + $0x48] sm:$0xf]
  %v180 = vld [vmem:[%s159 + $0x4c] sm:$0xf]
  %v181 = vld [vmem:[%s159 + $0x50] sm:$0x1]
  %v182 = vunpack.c.l.bf16 %v181
  %v183 = vpack.c.bf16 %v157, %v157
  %v184 = vperm.slane %v162, 0
  %186 = vrot.lane.b32.xlu0 %v183, 120
  %v187 = vpop.permute.xlu0 %186
  %v189 = vsel %vm38, %v187, 0
  %v192 = vsel %vm42, %v160, 0
  %194 = vmatpush.bf16.msra.mxu0 0
  %195 = vmatpush.bf16.msra.mxu0 0
  %196 = vmatpush.bf16.msra.mxu0 0
  %197 = vmatpush.bf16.msra.mxu0 0
  %198 = vmatpush.bf16.msra.mxu0 0
  %199 = vmatpush.bf16.msra.mxu0 0
  %200 = vmatpush.bf16.msra.mxu0 0
  %201 = vmatpush.bf16.msra.mxu0 %v192
  %202 = vmatmul.bf16.gmra.mxu0 %v189
  %v203 = vpop.f32.mrf.mxu0
  %v204 = vadd.f32 %v184, %v203
  %v205 = vpop.f32.mrf.mxu0
  %206 = vdwg.mxu0
  %v207 = vmul.f32 %v204, 0.01
  %v208 = vmax.f32 %v204, %v207
  %v209 = vpack.c.bf16 %v208, %v208
  %v210 = vperm.slane %v172, 0
  %v219 = vunpack.c.l.b16 %v163
  %v220 = vunpack.c.l.b16 %v164
  %v221 = vunpack.c.l.b16 %v165
  %v222 = vunpack.c.l.b16 %v166
  %v223 = vunpack.c.l.b16 %v167
  %v224 = vunpack.c.l.b16 %v168
  %v225 = vunpack.c.l.b16 %v169
  %v226 = vunpack.c.l.b16 %v170
  %v227 = vpack.c.b16 %v220, %v219
  %v228 = vpack.c.b16 %v222, %v221
  %v229 = vpack.c.b16 %v224, %v223
  %v230 = vpack.c.b16 %v226, %v225
  %v236 = vsel %vm87, %v209, 0
  %238 = vmatpush.bf16.msra.mxu0 0
  %239 = vmatpush.bf16.msra.mxu0 0
  %240 = vmatpush.bf16.msra.mxu0 0
  %241 = vmatpush.bf16.msra.mxu0 0
  %242 = vmatpush.bf16.msra.mxu0 %v230
  %243 = vmatpush.bf16.msra.mxu0 %v229
  %244 = vmatpush.bf16.msra.mxu0 %v228
  %245 = vmatpush.bf16.msra.mxu0 %v227
  %246 = vmatmul.bf16.gmra.mxu0 %v236
  %v247 = vpop.f32.mrf.mxu0
  %v248 = vadd.f32 %v210, %v247
  %v249 = vpop.f32.mrf.mxu0
  %250 = vdwg.mxu0
  %v251 = vmul.f32 %v248, 0.01
  %v252 = vmax.f32 %v248, %v251
  %v253 = vpack.c.bf16 %v252, %v252
  %v254 = vperm.slane %v182, 0
  %v263 = vunpack.c.l.b16 %v173
  %v264 = vunpack.c.l.b16 %v174
  %v265 = vunpack.c.l.b16 %v175
  %v266 = vunpack.c.l.b16 %v176
  %v267 = vunpack.c.l.b16 %v177
  %v268 = vunpack.c.l.b16 %v178
  %v269 = vunpack.c.l.b16 %v179
  %v270 = vunpack.c.l.b16 %v180
  %v271 = vpack.c.b16 %v264, %v263
  %v272 = vpack.c.b16 %v266, %v265
  %v273 = vpack.c.b16 %v268, %v267
  %v274 = vpack.c.b16 %v270, %v269
  %v280 = vsel %vm87, %v253, 0
  %282 = vmatpush.bf16.msra.mxu0 0
  %283 = vmatpush.bf16.msra.mxu0 0
  %284 = vmatpush.bf16.msra.mxu0 0
  %285 = vmatpush.bf16.msra.mxu0 0
  %286 = vmatpush.bf16.msra.mxu0 %v274
  %287 = vmatpush.bf16.msra.mxu0 %v273
  %288 = vmatpush.bf16.msra.mxu0 %v272
  %289 = vmatpush.bf16.msra.mxu0 %v271
  %290 = vmatmul.bf16.gmra.mxu0 %v280
  %v291 = vpop.f32.mrf.mxu0
  %v292 = vadd.f32 %v254, %v291
  %v293 = vpop.f32.mrf.mxu0
  %294 = vdwg.mxu0
  %v295 = vtanh.pop %v292
  %297 = vrot.lane.b32.xlu0 %v292, 120
  %v298 = vpop.permute.xlu0 %297
  %v300 = vsub.f32 %v12, %v298
  %v301 = vsub.f32 0.0, %v295
  %v302 = vmul.f32 %v301, 1.442695
  %v303 = vpow.pop %v302
  %v304 = vmul.f32 %v300, %v303
  %v305 = vadd.f32 %v158, %v295
  %s306 = scalar_lea.vmem %s1, 176
  %v307 = vld [vmem:[%s306] sm:$0xf]
  %v308 = vld [vmem:[%s306 + $0x4] sm:$0x1]
  %v309 = vunpack.c.l.bf16 %v308
  %v310 = vld [vmem:[%s306 + $0x8] sm:$0xf]
  %v311 = vld [vmem:[%s306 + $0xc] sm:$0xf]
  %v312 = vld [vmem:[%s306 + $0x10] sm:$0xf]
  %v313 = vld [vmem:[%s306 + $0x14] sm:$0xf]
  %v314 = vld [vmem:[%s306 + $0x18] sm:$0xf]
  %v315 = vld [vmem:[%s306 + $0x1c] sm:$0xf]
  %v316 = vld [vmem:[%s306 + $0x20] sm:$0xf]
  %v317 = vld [vmem:[%s306 + $0x24] sm:$0xf]
  %v318 = vld [vmem:[%s306 + $0x28] sm:$0x1]
  %v319 = vunpack.c.l.bf16 %v318
  %v320 = vld [vmem:[%s306 + $0x30] sm:$0xf]
  %v321 = vld [vmem:[%s306 + $0x34] sm:$0xf]
  %v322 = vld [vmem:[%s306 + $0x38] sm:$0xf]
  %v323 = vld [vmem:[%s306 + $0x3c] sm:$0xf]
  %v324 = vld [vmem:[%s306 + $0x40] sm:$0xf]
  %v325 = vld [vmem:[%s306 + $0x44] sm:$0xf]
  %v326 = vld [vmem:[%s306 + $0x48] sm:$0xf]
  %v327 = vld [vmem:[%s306 + $0x4c] sm:$0xf]
  %v328 = vld [vmem:[%s306 + $0x50] sm:$0x1]
  %v329 = vunpack.c.l.bf16 %v328
  %v330 = vpack.c.bf16 %v304, %v304
  %v331 = vperm.slane %v309, 0
  %v333 = vsel %vm38, %v330, 0
  %v336 = vsel %vm42, %v307, 0
  %338 = vmatpush.bf16.msra.mxu0 0
  %339 = vmatpush.bf16.msra.mxu0 0
  %340 = vmatpush.bf16.msra.mxu0 0
  %341 = vmatpush.bf16.msra.mxu0 0
  %342 = vmatpush.bf16.msra.mxu0 0
  %343 = vmatpush.bf16.msra.mxu0 0
  %344 = vmatpush.bf16.msra.mxu0 0
  %345 = vmatpush.bf16.msra.mxu0 %v336
  %346 = vmatmul.bf16.gmra.mxu0 %v333
  %v347 = vpop.f32.mrf.mxu0
  %v348 = vadd.f32 %v331, %v347
  %v349 = vpop.f32.mrf.mxu0
  %350 = vdwg.mxu0
  %v351 = vmul.f32 %v348, 0.01
  %v352 = vmax.f32 %v348, %v351
  %v353 = vpack.c.bf16 %v352, %v352
  %v354 = vperm.slane %v319, 0
  %v363 = vunpack.c.l.b16 %v310
  %v364 = vunpack.c.l.b16 %v311
  %v365 = vunpack.c.l.b16 %v312
  %v366 = vunpack.c.l.b16 %v313
  %v367 = vunpack.c.l.b16 %v314
  %v368 = vunpack.c.l.b16 %v315
  %v369 = vunpack.c.l.b16 %v316
  %v370 = vunpack.c.l.b16 %v317
  %v371 = vpack.c.b16 %v364, %v363
  %v372 = vpack.c.b16 %v366, %v365
  %v373 = vpack.c.b16 %v368, %v367
  %v374 = vpack.c.b16 %v370, %v369
  %v380 = vsel %vm87, %v353, 0
  %382 = vmatpush.bf16.msra.mxu0 0
  %383 = vmatpush.bf16.msra.mxu0 0
  %384 = vmatpush.bf16.msra.mxu0 0
  %385 = vmatpush.bf16.msra.mxu0 0
  %386 = vmatpush.bf16.msra.mxu0 %v374
  %387 = vmatpush.bf16.msra.mxu0 %v373
  %388 = vmatpush.bf16.msra.mxu0 %v372
  %389 = vmatpush.bf16.msra.mxu0 %v371
  %390 = vmatmul.bf16.gmra.mxu0 %v380
  %v391 = vpop.f32.mrf.mxu0
  %v392 = vadd.f32 %v354, %v391
  %v393 = vpop.f32.mrf.mxu0
  %394 = vdwg.mxu0
  %v395 = vmul.f32 %v392, 0.01
  %v396 = vmax.f32 %v392, %v395
  %v397 = vpack.c.bf16 %v396, %v396
  %v398 = vperm.slane %v329, 0
  %v407 = vunpack.c.l.b16 %v320
  %v408 = vunpack.c.l.b16 %v321
  %v409 = vunpack.c.l.b16 %v322
  %v410 = vunpack.c.l.b16 %v323
  %v411 = vunpack.c.l.b16 %v324
  %v412 = vunpack.c.l.b16 %v325
  %v413 = vunpack.c.l.b16 %v326
  %v414 = vunpack.c.l.b16 %v327
  %v415 = vpack.c.b16 %v408, %v407
  %v416 = vpack.c.b16 %v410, %v409
  %v417 = vpack.c.b16 %v412, %v411
  %v418 = vpack.c.b16 %v414, %v413
  %v424 = vsel %vm87, %v397, 0
  %426 = vmatpush.bf16.msra.mxu0 0
  %427 = vmatpush.bf16.msra.mxu0 0
  %428 = vmatpush.bf16.msra.mxu0 0
  %429 = vmatpush.bf16.msra.mxu0 0
  %430 = vmatpush.bf16.msra.mxu0 %v418
  %431 = vmatpush.bf16.msra.mxu0 %v417
  %432 = vmatpush.bf16.msra.mxu0 %v416
  %433 = vmatpush.bf16.msra.mxu0 %v415
  %434 = vmatmul.bf16.gmra.mxu0 %v424
  %v435 = vpop.f32.mrf.mxu0
  %v436 = vadd.f32 %v398, %v435
  %v437 = vpop.f32.mrf.mxu0
  %438 = vdwg.mxu0
  %v439 = vtanh.pop %v436
  %v440 = vsub.f32 %v157, %v436
  %v441 = vsub.f32 0.0, %v439
  %v442 = vmul.f32 %v441, 1.442695
  %v443 = vpow.pop %v442
  %445 = vrot.lane.b32.xlu0 %v443, 8
  %v446 = vpop.permute.xlu0 %445
  %v448 = vmul.f32 %v440, %v446
  %v449 = vadd.f32 %v305, %v439
  %s450 = scalar_lea.vmem %s1, 264
  %v451 = vld [vmem:[%s450] sm:$0xf]
  %v452 = vld [vmem:[%s450 + $0x4] sm:$0x1]
  %v453 = vunpack.c.l.bf16 %v452
  %v454 = vld [vmem:[%s450 + $0x8] sm:$0xf]
  %v455 = vld [vmem:[%s450 + $0xc] sm:$0xf]
  %v456 = vld [vmem:[%s450 + $0x10] sm:$0xf]
  %v457 = vld [vmem:[%s450 + $0x14] sm:$0xf]
  %v458 = vld [vmem:[%s450 + $0x18] sm:$0xf]
  %v459 = vld [vmem:[%s450 + $0x1c] sm:$0xf]
  %v460 = vld [vmem:[%s450 + $0x20] sm:$0xf]
  %v461 = vld [vmem:[%s450 + $0x24] sm:$0xf]
  %v462 = vld [vmem:[%s450 + $0x28] sm:$0x1]
  %v463 = vunpack.c.l.bf16 %v462
  %v464 = vld [vmem:[%s450 + $0x30] sm:$0xf]
  %v465 = vld [vmem:[%s450 + $0x34] sm:$0xf]
  %v466 = vld [vmem:[%s450 + $0x38] sm:$0xf]
  %v467 = vld [vmem:[%s450 + $0x3c] sm:$0xf]
  %v468 = vld [vmem:[%s450 + $0x40] sm:$0xf]
  %v469 = vld [vmem:[%s450 + $0x44] sm:$0xf]
  %v470 = vld [vmem:[%s450 + $0x48] sm:$0xf]
  %v471 = vld [vmem:[%s450 + $0x4c] sm:$0xf]
  %v472 = vld [vmem:[%s450 + $0x50] sm:$0x1]
  %v473 = vunpack.c.l.bf16 %v472
  %v474 = vpack.c.bf16 %v448, %v448
  %v475 = vperm.slane %v453, 0
  %477 = vrot.lane.b32.xlu0 %v474, 120
  %v478 = vpop.permute.xlu0 %477
  %v480 = vsel %vm38, %v478, 0
  %v483 = vsel %vm42, %v451, 0
  %485 = vmatpush.bf16.msra.mxu0 0
  %486 = vmatpush.bf16.msra.mxu0 0
  %487 = vmatpush.bf16.msra.mxu0 0
  %488 = vmatpush.bf16.msra.mxu0 0
  %489 = vmatpush.bf16.msra.mxu0 0
  %490 = vmatpush.bf16.msra.mxu0 0
  %491 = vmatpush.bf16.msra.mxu0 0
  %492 = vmatpush.bf16.msra.mxu0 %v483
  %493 = vmatmul.bf16.gmra.mxu0 %v480
  %v494 = vpop.f32.mrf.mxu0
  %v495 = vadd.f32 %v475, %v494
  %v496 = vpop.f32.mrf.mxu0
  %497 = vdwg.mxu0
  %v498 = vmul.f32 %v495, 0.01
  %v499 = vmax.f32 %v495, %v498
  %v500 = vpack.c.bf16 %v499, %v499
  %v501 = vperm.slane %v463, 0
  %v510 = vunpack.c.l.b16 %v454
  %v511 = vunpack.c.l.b16 %v455
  %v512 = vunpack.c.l.b16 %v456
  %v513 = vunpack.c.l.b16 %v457
  %v514 = vunpack.c.l.b16 %v458
  %v515 = vunpack.c.l.b16 %v459
  %v516 = vunpack.c.l.b16 %v460
  %v517 = vunpack.c.l.b16 %v461
  %v518 = vpack.c.b16 %v511, %v510
  %v519 = vpack.c.b16 %v513, %v512
  %v520 = vpack.c.b16 %v515, %v514
  %v521 = vpack.c.b16 %v517, %v516
  %v527 = vsel %vm87, %v500, 0
  %529 = vmatpush.bf16.msra.mxu0 0
  %530 = vmatpush.bf16.msra.mxu0 0
  %531 = vmatpush.bf16.msra.mxu0 0
  %532 = vmatpush.bf16.msra.mxu0 0
  %533 = vmatpush.bf16.msra.mxu0 %v521
  %534 = vmatpush.bf16.msra.mxu0 %v520
  %535 = vmatpush.bf16.msra.mxu0 %v519
  %536 = vmatpush.bf16.msra.mxu0 %v518
  %537 = vmatmul.bf16.gmra.mxu0 %v527
  %v538 = vpop.f32.mrf.mxu0
  %v539 = vadd.f32 %v501, %v538
  %v540 = vpop.f32.mrf.mxu0
  %541 = vdwg.mxu0
  %v542 = vmul.f32 %v539, 0.01
  %v543 = vmax.f32 %v539, %v542
  %v544 = vpack.c.bf16 %v543, %v543
  %v545 = vperm.slane %v473, 0
  %v554 = vunpack.c.l.b16 %v464
  %v555 = vunpack.c.l.b16 %v465
  %v556 = vunpack.c.l.b16 %v466
  %v557 = vunpack.c.l.b16 %v467
  %v558 = vunpack.c.l.b16 %v468
  %v559 = vunpack.c.l.b16 %v469
  %v560 = vunpack.c.l.b16 %v470
  %v561 = vunpack.c.l.b16 %v471
  %v562 = vpack.c.b16 %v555, %v554
  %v563 = vpack.c.b16 %v557, %v556
  %v564 = vpack.c.b16 %v559, %v558
  %v565 = vpack.c.b16 %v561, %v560
  %v571 = vsel %vm87, %v544, 0
  %573 = vmatpush.bf16.msra.mxu0 0
  %574 = vmatpush.bf16.msra.mxu0 0
  %575 = vmatpush.bf16.msra.mxu0 0
  %576 = vmatpush.bf16.msra.mxu0 0
  %577 = vmatpush.bf16.msra.mxu0 %v565
  %578 = vmatpush.bf16.msra.mxu0 %v564
  %579 = vmatpush.bf16.msra.mxu0 %v563
  %580 = vmatpush.bf16.msra.mxu0 %v562
  %581 = vmatmul.bf16.gmra.mxu0 %v571
  %v582 = vpop.f32.mrf.mxu0
  %v583 = vadd.f32 %v545, %v582
  %v584 = vpop.f32.mrf.mxu0
  %585 = vdwg.mxu0
  %v586 = vtanh.pop %v583
  %588 = vrot.lane.b32.xlu0 %v583, 120
  %v589 = vpop.permute.xlu0 %588
  %v591 = vsub.f32 %v304, %v589
  %v592 = vsub.f32 0.0, %v586
  %v593 = vmul.f32 %v592, 1.442695
  %v594 = vpow.pop %v593
  %v595 = vmul.f32 %v591, %v594
  %v596 = vadd.f32 %v449, %v586
  %v597 = vmul.f32 %v595, %v595
  %v598 = vmul.f32 %v448, %v448
  %600 = vrot.lane.b32.xlu0 %v598, 120
  %v601 = vpop.permute.xlu0 %600
  %v603 = vadd.f32 %v597, %v601
  %v604 = vmul.f32 %v603, -0.5
  %v605 = vsub.f32 %v604, %v596
  %v606 = vsel %vm38, %v605, 0.0
  %607 = vadd.xlane.f32.xlu0 %v606
  %v608 = vpop.xlane.xlu0 %607
  %v609 = vsub.f32 %v608, 14.703016
  %vm610 = vcmask 7168
  %611 = vst.msk [vmem:[%s2] sm:$0xff] %vm610, %v609
  // Predicated region
  $region10: #{realnvp_forward.1} parent=0 // pred_check
    _
  $region11: #{realnvp_forward.1} parent=0 // pred_check_branch
    %613 = sbr.rel (0) target = $region13
  $region12: #{realnvp_forward.1} parent=0 // pred_region
    _
  $region13: #{realnvp_forward.1} parent=0 // pred_fallthru
    _
  // Predicated region
  $region14: #{realnvp_forward.1} parent=0 // pred_check
    _
  $region15: #{realnvp_forward.1} parent=0 // pred_check_branch
    %615 = sbr.rel (0) target = $region17
  $region16: #{realnvp_forward.1} parent=0 // pred_region
    _
  $region17: #{realnvp_forward.1} parent=0 // pred_fallthru
    _

</llo_original>
